<compile_context>
chip_gen: v6e
topology: v6e:2x2x1
jax: 0.10.0
libtpu: 0.0.40
codegen_flags: <defaults>
</compile_context>

<pallas_src>
import functools

import jax
import jax.numpy as jnp
from jax.experimental import pallas as pl
from jax.experimental.pallas import tpu as pltpu


def _cnn_kernel(x_ref, w_ref, b_ref, out_ref, *, l_out, e, k):
    """One batch tile: per-position matmul + running max -> bias -> ReLU.

    x_ref:   (TB, L*E)   compact input slab, lane index = l*E + e
    w_ref:   (K*E, F)    flattened conv weights (replicated across tiles)
    b_ref:   (1, F)      conv bias (replicated)
    out_ref: (TB, F)     pooled output for this tile
    """
    xv = x_ref[...]          # whole tile; small tiles live in vregs, large in VMEM
    w = w_ref[...]

    m = None
    # Static Python loop over conv positions: static lane slices (cheap), one small
    # MXU matmul each, immediately folded into the running max (pure VPU maximum),
    # so no (TB*L_out, F) intermediate ever exists.
    for l in range(l_out):
        win = xv[:, l * e:(l + k) * e]                       # (TB, K*E)
        p = jnp.dot(win, w, preferred_element_type=jnp.float32)  # (TB, F)
        m = p if m is None else jnp.maximum(m, p)

    # bias + ReLU after the max (exact: both are monotone per filter).
    out_ref[...] = jnp.maximum(m + b_ref[...], 0.0).astype(out_ref.dtype)


@functools.partial(jax.jit, static_argnames=("kernel_size",))
def cnn_forward(x_ncl, weight_fek, bias_f, *, kernel_size):
    """Forward pass matching the PyTorch CNN module.

    x_ncl:      (B, E, L)   PyTorch-style NCL input
    weight_fek: (F, E, K)   PyTorch-style Conv1d weight
    bias_f:     (F,)        Conv1d bias
    returns:    (B, F)      == maxpool(relu(conv1d(x))).squeeze()
    """
    b, e, l = x_ncl.shape
    f = weight_fek.shape[0]
    k = kernel_size
    l_out = l - k + 1
    if l_out < 1:
        raise ValueError(
            f"max_word_length ({l}) must be >= kernel_size ({k}) for a valid conv.")

    # --- minimal wrapper-side layout glue (plain XLA) --------------------------
    # Only the unavoidable NCL -> NLE transpose; the window expansion happens
    # inside the kernel via lane slices, so HBM traffic for x is exactly B*L*E*4.
    x_slab = jnp.transpose(x_ncl, (0, 2, 1)).reshape(b, l * e)      # (B, L*E)
    # weight[(k*E + e), f] = weight_fek[f, e, k] matches the window lane order.
    w_flat = jnp.transpose(weight_fek, (2, 1, 0)).reshape(k * e, f)  # (K*E, F)
    bias_2d = bias_f.reshape(1, f)

    # --- batch tiling -----------------------------------------------------------
    if b <= 8:
        tb = b            # single block equal to the full (tiny) batch dim
    else:
        # >= 2 grid steps so the "parallel" axis can use both TensorCores (v7x),
        # tile a multiple of 8 (sublane alignment), capped so a double-buffered
        # x tile plus in-loop temporaries stays well under every generation's
        # scoped-VMEM budget (v7x: 64 MiB physical / 32 MiB scoped default).
        half = ((-(-b // 2)) + 7) // 8 * 8
        tb = max(8, min(1024, half))
    grid = ((b + tb - 1) // tb,)

    # NOTE: when B is not a multiple of TB, the last x block reads past the array
    # (Pallas OOB-read semantics).  That is safe here: the matmul / max / ReLU are
    # strictly row-independent, so garbage rows only produce garbage output rows,
    # which Pallas masks out on the final (partial) output-block write.

    kernel = functools.partial(_cnn_kernel, l_out=l_out, e=e, k=k)

    out = pl.pallas_call(
        kernel,
        out_shape=jax.ShapeDtypeStruct((b, f), x_ncl.dtype),
        grid_spec=pltpu.PrefetchScalarGridSpec(
            num_scalar_prefetch=0,
            grid=grid,
            in_specs=[
                pl.BlockSpec((tb, l * e), lambda i: (i, 0)),   # compact x slab
                pl.BlockSpec((k * e, f), lambda i: (0, 0)),    # flattened weights
                pl.BlockSpec((1, f), lambda i: (0, 0)),        # bias
            ],
            out_specs=pl.BlockSpec((tb, f), lambda i: (i, 0)),
        ),
        compiler_params=pltpu.CompilerParams(
            # batch tiles are independent -> shard across TensorCores on v7x
            dimension_semantics=("parallel",),
            # safe on every generation (== v6e/v7x scoped default, raises v5e's 16 MiB)
            vmem_limit_bytes=32 * 1024 * 1024,
        ),
    )(x_slab, w_flat, bias_2d)

    return out


def reference_forward(x_ncl, weight_fek, bias_f, kernel_size):
    """Pure-JAX reference mirroring the PyTorch module (for verification)."""
    conv = jax.lax.conv_general_dilated(
        x_ncl, weight_fek,
        window_strides=(1,), padding="VALID",
        dimension_numbers=("NCH", "OIH", "NCH"),
    ) + bias_f.reshape(1, -1, 1)
    return jnp.max(jax.nn.relu(conv), axis=-1)


if __name__ == "__main__":
    # Small shapes consistent with the module's forward:
    # batch=2, char-embed=32, max word length=16, kernel=5, filters=32.
    batch = 2
    input_embed_size = 32
    max_word_length = 16
    kernel_size = 5
    num_filter = 32

    key = jax.random.PRNGKey(0)
    kx, kw, kb = jax.random.split(key, 3)

    x = jax.random.normal(
        kx, (batch, input_embed_size, max_word_length), dtype=jnp.float32)
    # Deterministic param init (shapes from nn.Conv1d(E, F, K)).
    fan_in = input_embed_size * kernel_size
    bound = 1.0 / (fan_in ** 0.5)
    weight = jax.random.uniform(
        kw, (num_filter, input_embed_size, kernel_size),
        minval=-bound, maxval=bound, dtype=jnp.float32)
    bias = jax.random.uniform(
        kb, (num_filter,), minval=-bound, maxval=bound, dtype=jnp.float32)

    out = cnn_forward(x, weight, bias, kernel_size=kernel_size)
    out = jax.block_until_ready(out)

    ref = reference_forward(x, weight, bias, kernel_size)
    assert out.shape == (batch, num_filter), out.shape
    assert jnp.allclose(out, ref, atol=1e-5, rtol=1e-5), "mismatch vs reference"

    print("KERNEL_OK")
</pallas_src>

<mosaic_0001>
module attributes {stable_mosaic.version = 11 : i64} {
  func.func @_cnn_kernel(%arg0: i32, %arg1: memref<2x512xf32, #tpu.memory_space<vmem>>, %arg2: memref<160x32xf32, #tpu.memory_space<vmem>>, %arg3: memref<1x32xf32, #tpu.memory_space<vmem>>, %arg4: memref<2x32xf32, #tpu.memory_space<vmem>>) attributes {dimension_semantics = [#tpu.dimension_semantics<parallel>], iteration_bounds = array<i64: 1>, scalar_prefetch = 0 : i64, scratch_operands = 0 : i64, tpu.core_type = #tpu.core_type<tc>, window_params = [{transform_indices = @transform_0, window_bounds = array<i64: 2, 512>}, {pipeline_mode = #tpu.pipeline_mode<synchronous>, transform_indices = @transform_1, window_bounds = array<i64: 160, 32>}, {pipeline_mode = #tpu.pipeline_mode<synchronous>, transform_indices = @transform_2, window_bounds = array<i64: 1, 32>}, {transform_indices = @transform_3, window_bounds = array<i64: 2, 32>}]} {
    %c0 = arith.constant 0 : index
    %c0_0 = arith.constant 0 : index
    %0 = vector.load %arg1[%c0, %c0_0] : memref<2x512xf32, #tpu.memory_space<vmem>>, vector<2x512xf32>
    %c0_1 = arith.constant 0 : index
    %c0_2 = arith.constant 0 : index
    %1 = vector.load %arg2[%c0_1, %c0_2] : memref<160x32xf32, #tpu.memory_space<vmem>>, vector<160x32xf32>
    %2 = vector.extract_strided_slice %0 {offsets = [0, 0], sizes = [2, 160], strides = [1, 1]} : vector<2x512xf32> to vector<2x160xf32>
    %cst = arith.constant dense<0.000000e+00> : vector<2x32xf32>
    %3 = tpu.matmul %2, %1, %cst {dimension_numbers = #tpu.dot_dimension_numbers<[1], [0], [0], [1], [0, 0, 1, 1], [], []>} : vector<2x160xf32>, vector<160x32xf32>, vector<2x32xf32> -> vector<2x32xf32>
    %4 = vector.extract_strided_slice %0 {offsets = [0, 32], sizes = [2, 160], strides = [1, 1]} : vector<2x512xf32> to vector<2x160xf32>
    %cst_3 = arith.constant dense<0.000000e+00> : vector<2x32xf32>
    %5 = tpu.matmul %4, %1, %cst_3 {dimension_numbers = #tpu.dot_dimension_numbers<[1], [0], [0], [1], [0, 0, 1, 1], [], []>} : vector<2x160xf32>, vector<160x32xf32>, vector<2x32xf32> -> vector<2x32xf32>
    %6 = arith.maximumf %3, %5 : vector<2x32xf32>
    %7 = vector.extract_strided_slice %0 {offsets = [0, 64], sizes = [2, 160], strides = [1, 1]} : vector<2x512xf32> to vector<2x160xf32>
    %cst_4 = arith.constant dense<0.000000e+00> : vector<2x32xf32>
    %8 = tpu.matmul %7, %1, %cst_4 {dimension_numbers = #tpu.dot_dimension_numbers<[1], [0], [0], [1], [0, 0, 1, 1], [], []>} : vector<2x160xf32>, vector<160x32xf32>, vector<2x32xf32> -> vector<2x32xf32>
    %9 = arith.maximumf %6, %8 : vector<2x32xf32>
    %10 = vector.extract_strided_slice %0 {offsets = [0, 96], sizes = [2, 160], strides = [1, 1]} : vector<2x512xf32> to vector<2x160xf32>
    %cst_5 = arith.constant dense<0.000000e+00> : vector<2x32xf32>
    %11 = tpu.matmul %10, %1, %cst_5 {dimension_numbers = #tpu.dot_dimension_numbers<[1], [0], [0], [1], [0, 0, 1, 1], [], []>} : vector<2x160xf32>, vector<160x32xf32>, vector<2x32xf32> -> vector<2x32xf32>
    %12 = arith.maximumf %9, %11 : vector<2x32xf32>
    %13 = vector.extract_strided_slice %0 {offsets = [0, 128], sizes = [2, 160], strides = [1, 1]} : vector<2x512xf32> to vector<2x160xf32>
    %cst_6 = arith.constant dense<0.000000e+00> : vector<2x32xf32>
    %14 = tpu.matmul %13, %1, %cst_6 {dimension_numbers = #tpu.dot_dimension_numbers<[1], [0], [0], [1], [0, 0, 1, 1], [], []>} : vector<2x160xf32>, vector<160x32xf32>, vector<2x32xf32> -> vector<2x32xf32>
    %15 = arith.maximumf %12, %14 : vector<2x32xf32>
    %16 = vector.extract_strided_slice %0 {offsets = [0, 160], sizes = [2, 160], strides = [1, 1]} : vector<2x512xf32> to vector<2x160xf32>
    %cst_7 = arith.constant dense<0.000000e+00> : vector<2x32xf32>
    %17 = tpu.matmul %16, %1, %cst_7 {dimension_numbers = #tpu.dot_dimension_numbers<[1], [0], [0], [1], [0, 0, 1, 1], [], []>} : vector<2x160xf32>, vector<160x32xf32>, vector<2x32xf32> -> vector<2x32xf32>
    %18 = arith.maximumf %15, %17 : vector<2x32xf32>
    %19 = vector.extract_strided_slice %0 {offsets = [0, 192], sizes = [2, 160], strides = [1, 1]} : vector<2x512xf32> to vector<2x160xf32>
    %cst_8 = arith.constant dense<0.000000e+00> : vector<2x32xf32>
    %20 = tpu.matmul %19, %1, %cst_8 {dimension_numbers = #tpu.dot_dimension_numbers<[1], [0], [0], [1], [0, 0, 1, 1], [], []>} : vector<2x160xf32>, vector<160x32xf32>, vector<2x32xf32> -> vector<2x32xf32>
    %21 = arith.maximumf %18, %20 : vector<2x32xf32>
    %22 = vector.extract_strided_slice %0 {offsets = [0, 224], sizes = [2, 160], strides = [1, 1]} : vector<2x512xf32> to vector<2x160xf32>
    %cst_9 = arith.constant dense<0.000000e+00> : vector<2x32xf32>
    %23 = tpu.matmul %22, %1, %cst_9 {dimension_numbers = #tpu.dot_dimension_numbers<[1], [0], [0], [1], [0, 0, 1, 1], [], []>} : vector<2x160xf32>, vector<160x32xf32>, vector<2x32xf32> -> vector<2x32xf32>
    %24 = arith.maximumf %21, %23 : vector<2x32xf32>
    %25 = vector.extract_strided_slice %0 {offsets = [0, 256], sizes = [2, 160], strides = [1, 1]} : vector<2x512xf32> to vector<2x160xf32>
    %cst_10 = arith.constant dense<0.000000e+00> : vector<2x32xf32>
    %26 = tpu.matmul %25, %1, %cst_10 {dimension_numbers = #tpu.dot_dimension_numbers<[1], [0], [0], [1], [0, 0, 1, 1], [], []>} : vector<2x160xf32>, vector<160x32xf32>, vector<2x32xf32> -> vector<2x32xf32>
    %27 = arith.maximumf %24, %26 : vector<2x32xf32>
    %28 = vector.extract_strided_slice %0 {offsets = [0, 288], sizes = [2, 160], strides = [1, 1]} : vector<2x512xf32> to vector<2x160xf32>
    %cst_11 = arith.constant dense<0.000000e+00> : vector<2x32xf32>
    %29 = tpu.matmul %28, %1, %cst_11 {dimension_numbers = #tpu.dot_dimension_numbers<[1], [0], [0], [1], [0, 0, 1, 1], [], []>} : vector<2x160xf32>, vector<160x32xf32>, vector<2x32xf32> -> vector<2x32xf32>
    %30 = arith.maximumf %27, %29 : vector<2x32xf32>
    %31 = vector.extract_strided_slice %0 {offsets = [0, 320], sizes = [2, 160], strides = [1, 1]} : vector<2x512xf32> to vector<2x160xf32>
    %cst_12 = arith.constant dense<0.000000e+00> : vector<2x32xf32>
    %32 = tpu.matmul %31, %1, %cst_12 {dimension_numbers = #tpu.dot_dimension_numbers<[1], [0], [0], [1], [0, 0, 1, 1], [], []>} : vector<2x160xf32>, vector<160x32xf32>, vector<2x32xf32> -> vector<2x32xf32>
    %33 = arith.maximumf %30, %32 : vector<2x32xf32>
    %34 = vector.extract_strided_slice %0 {offsets = [0, 352], sizes = [2, 160], strides = [1, 1]} : vector<2x512xf32> to vector<2x160xf32>
    %cst_13 = arith.constant dense<0.000000e+00> : vector<2x32xf32>
    %35 = tpu.matmul %34, %1, %cst_13 {dimension_numbers = #tpu.dot_dimension_numbers<[1], [0], [0], [1], [0, 0, 1, 1], [], []>} : vector<2x160xf32>, vector<160x32xf32>, vector<2x32xf32> -> vector<2x32xf32>
    %36 = arith.maximumf %33, %35 : vector<2x32xf32>
    %c0_14 = arith.constant 0 : index
    %c0_15 = arith.constant 0 : index
    %37 = vector.load %arg3[%c0_14, %c0_15] : memref<1x32xf32, #tpu.memory_space<vmem>>, vector<1x32xf32>
    %38 = vector.broadcast %37 : vector<1x32xf32> to vector<2x32xf32>
    %39 = arith.addf %36, %38 : vector<2x32xf32>
    %cst_16 = arith.constant 0.000000e+00 : f32
    %40 = vector.broadcast %cst_16 : f32 to vector<2x32xf32>
    %41 = arith.maximumf %39, %40 : vector<2x32xf32>
    %c0_17 = arith.constant 0 : index
    %c0_18 = arith.constant 0 : index
    %42 = vector.load %arg4[%c0_17, %c0_18] : memref<2x32xf32, #tpu.memory_space<vmem>>, vector<2x32xf32>
    tpu.vector_store %arg4[%c0_17, %c0_18], %41 {strides = array<i32>} : memref<2x32xf32, #tpu.memory_space<vmem>>, vector<2x32xf32>,
    return
  }
  func.func @transform_0(%arg0: i32) -> (i32, i32) {
    %c0_i32 = arith.constant 0 : i32
    %c0_i32_0 = arith.constant 0 : i32
    return %arg0, %c0_i32 : i32, i32
  }
  func.func @transform_1(%arg0: i32) -> (i32, i32) {
    %c0_i32 = arith.constant 0 : i32
    %c0_i32_0 = arith.constant 0 : i32
    %c0_i32_1 = arith.constant 0 : i32
    return %c0_i32, %c0_i32_0 : i32, i32
  }
  func.func @transform_2(%arg0: i32) -> (i32, i32) {
    %c0_i32 = arith.constant 0 : i32
    %c0_i32_0 = arith.constant 0 : i32
    %c0_i32_1 = arith.constant 0 : i32
    return %c0_i32, %c0_i32_0 : i32, i32
  }
  func.func @transform_3(%arg0: i32) -> (i32, i32) {
    %c0_i32 = arith.constant 0 : i32
    %c0_i32_0 = arith.constant 0 : i32
    return %arg0, %c0_i32 : i32, i32
  }
}

</mosaic_0001>

<llo_original>
// kernel: cnn_forward.1
$region0: #{cnn_forward.1}
  #allocation0 [shape = 'u32[]', space=smem, size = 0x4, offset = 0x4, fixed_abs, tag = 'smem constant byte address 0x4 - core index']
  #allocation1 [shape = 'u32[144,128]{1,0:T(1,128)}', space=vmem, size = 0x12000, scoped, tag = 'internal scratch']
  %s0 = inlined_call_operand.vmem [shape: f32[2,512], index: 0, kind: input, shape index: {}]
  %s1 = inlined_call_operand.vmem [shape: f32[160,32], index: 1, kind: input, shape index: {}]
  %s2 = inlined_call_operand.vmem [shape: f32[1,32], index: 2, kind: input, shape index: {}]
  %s3 = inlined_call_operand.hbm [shape: f32[2,32], index: 3, kind: output, shape index: {}]
  %s4 = sld [smem:[#allocation0]]
  $region22: #{cnn_forward.1} parent=0
    _
  %s6 = ssub.s32 1, %s4
  %s7 = scalar_select 0, %s6, %s4
  $region1: #{cnn_forward.1} parent=0
    #allocation2 [shape = 'u8[1024]{0}', space=vmem, size = 0x400, scoped, tag = 'output window, operand 0, single buffered']
    #allocation3 [shape = 's32[1]{0}', space=sflag, size = 0x4, scoped, tag = 'scoped memory for cnn_forward.1']
    %8 = vsyncpa [#allocation3], 0
    // Predicated region
    $region2: #{cnn_forward.1} parent=1 // pred_check
      _
    $region3: #{cnn_forward.1} parent=1 // pred_check_branch
      %10 = sbr.rel (0) target = $region5
    $region4: #{cnn_forward.1} parent=1 // pred_region
      _
    $region5: #{cnn_forward.1} parent=1 // pred_fallthru
      _
    // Predicated region
    $region6: #{cnn_forward.1} parent=1 // pred_check
      _
    $region7: #{cnn_forward.1} parent=1 // pred_check_branch
      %12 = sbr.rel (0) target = $region9
    $region8: #{cnn_forward.1} parent=1 // pred_region
      _
    $region9: #{cnn_forward.1} parent=1 // pred_fallthru
      _
    // Predicated region
    $region10: #{cnn_forward.1} parent=1 // pred_check
      _
    $region11: #{cnn_forward.1} parent=1 // pred_check_branch
      %14 = sbr.rel (0) target = $region13
    $region12: #{cnn_forward.1} parent=1 // pred_region
      _
    $region13: #{cnn_forward.1} parent=1 // pred_fallthru
      _
    %v15 = vld [vmem:[%s0] sm:$0xff]
    %v16 = vld [vmem:[%s1] sm:$0xff]
    %v17 = vld [vmem:[%s1 + $0x8] sm:$0xff]
    %v18 = vld [vmem:[%s1 + $0x10] sm:$0xff]
    %v19 = vld [vmem:[%s1 + $0x18] sm:$0xff]
    %v20 = vld [vmem:[%s1 + $0x20] sm:$0xff]
    %v21 = vld [vmem:[%s1 + $0x28] sm:$0xff]
    %v22 = vld [vmem:[%s1 + $0x30] sm:$0xff]
    %v23 = vld [vmem:[%s1 + $0x38] sm:$0xff]
    %v24 = vld [vmem:[%s1 + $0x40] sm:$0xff]
    %v25 = vld [vmem:[%s1 + $0x48] sm:$0xff]
    %v26 = vld [vmem:[%s1 + $0x50] sm:$0xff]
    %v27 = vld [vmem:[%s1 + $0x58] sm:$0xff]
    %v28 = vld [vmem:[%s1 + $0x60] sm:$0xff]
    %v29 = vld [vmem:[%s1 + $0x68] sm:$0xff]
    %v30 = vld [vmem:[%s1 + $0x70] sm:$0xff]
    %v31 = vld [vmem:[%s1 + $0x78] sm:$0xff]
    %v32 = vld [vmem:[%s1 + $0x80] sm:$0xff]
    %v33 = vld [vmem:[%s1 + $0x88] sm:$0xff]
    %v34 = vld [vmem:[%s1 + $0x90] sm:$0xff]
    %v35 = vld [vmem:[%s1 + $0x98] sm:$0xff]
    %v38 = vunpack.c.l.s4 1983009808
    %v39 = vunpack.c.0.s8 %v38
    %v40 = vlaneseq
    %v41 = vshrl.u32 %v40, 7
    %v42 = vsub.s32 %v39, %v41
    %v43 = vrot.slane %v15, %v42
    %v44 = vcombine.high %v43, %v43
    %vm46 = vcmask 261120
    %v47 = vsel %vm46, %v44, 0
    %49 = vmatprep.subr.mxu0 0.0
    %50 = vmatpush1.msra.mxu0 %v31
    %51 = vmatprep.subr.mxu0 0.0
    %52 = vmatpush1.msra.mxu0 %v30
    %53 = vmatprep.subr.mxu0 0.0
    %54 = vmatpush1.msra.mxu0 %v29
    %55 = vmatprep.subr.mxu0 0.0
    %56 = vmatpush1.msra.mxu0 %v28
    %57 = vmatprep.subr.mxu0 0.0
    %58 = vmatpush1.msra.mxu0 %v27
    %59 = vmatprep.subr.mxu0 0.0
    %60 = vmatpush1.msra.mxu0 %v26
    %61 = vmatprep.subr.mxu0 0.0
    %62 = vmatpush1.msra.mxu0 %v25
    %63 = vmatprep.subr.mxu0 0.0
    %64 = vmatpush1.msra.mxu0 %v24
    %65 = vmatprep.subr.mxu0 0.0
    %66 = vmatpush1.msra.mxu0 %v23
    %67 = vmatprep.subr.mxu0 0.0
    %68 = vmatpush1.msra.mxu0 %v22
    %69 = vmatprep.subr.mxu0 0.0
    %70 = vmatpush1.msra.mxu0 %v21
    %71 = vmatprep.subr.mxu0 0.0
    %72 = vmatpush1.msra.mxu0 %v20
    %73 = vmatprep.subr.mxu0 0.0
    %74 = vmatpush1.msra.mxu0 %v19
    %75 = vmatprep.subr.mxu0 0.0
    %76 = vmatpush1.msra.mxu0 %v18
    %77 = vmatprep.subr.mxu0 0.0
    %78 = vmatpush1.msra.mxu0 %v17
    %79 = vmatprep.subr.mxu0 0.0
    %80 = vmatpush1.msra.mxu0 %v16
    %81 = vmatprep.subr.mxu0 0.0
    %82 = vmatpush2.msra.mxu0 0.0
    %83 = vmatprep.subr.mxu0 0.0
    %84 = vmatpush2.msra.mxu0 0.0
    %85 = vmatprep.subr.mxu0 0.0
    %86 = vmatpush2.msra.mxu0 0.0
    %87 = vmatprep.subr.mxu0 0.0
    %88 = vmatpush2.msra.mxu0 0.0
    %89 = vmatprep.subr.mxu0 0.0
    %90 = vmatpush2.msra.mxu0 0.0
    %91 = vmatprep.subr.mxu0 0.0
    %92 = vmatpush2.msra.mxu0 0.0
    %93 = vmatprep.subr.mxu0 0.0
    %94 = vmatpush2.msra.mxu0 0.0
    %95 = vmatprep.subr.mxu0 0.0
    %96 = vmatpush2.msra.mxu0 0.0
    %97 = vmatprep.subr.mxu0 0.0
    %98 = vmatpush2.msra.mxu0 0.0
    %99 = vmatprep.subr.mxu0 0.0
    %100 = vmatpush2.msra.mxu0 0.0
    %101 = vmatprep.subr.mxu0 0.0
    %102 = vmatpush2.msra.mxu0 0.0
    %103 = vmatprep.subr.mxu0 0.0
    %104 = vmatpush2.msra.mxu0 0.0
    %105 = vmatprep.subr.mxu0 0.0
    %106 = vmatpush2.msra.mxu0 %v35
    %107 = vmatprep.subr.mxu0 0.0
    %108 = vmatpush2.msra.mxu0 %v34
    %109 = vmatprep.subr.mxu0 0.0
    %110 = vmatpush2.msra.mxu0 %v33
    %111 = vmatprep.subr.mxu0 0.0
    %112 = vmatpush2.msra.mxu0 %v32
    %113 = vmatprep.mubr.f32.mxu0 %v47
    %114 = vmatmul.mubr.f32.gmra.mxu0 %v43
    %v115 = vpop.f32.mrf.mxu0
    %v116 = vadd.f32 0.0, %v115
    %v117 = vpop.f32.mrf.mxu0
    %118 = vdwg.mxu0
    %119 = vrot.lane.b32.xlu0 %v43, 96
    %v120 = vpop.permute.xlu0 %119
    %121 = vrot.lane.b32.xlu0 %v44, 96
    %v122 = vpop.permute.xlu0 %121
    %vm123 = vcmask 785408
    %v124 = vsel %vm123, %v120, %v122
    %v126 = vsel %vm46, %v122, 0
    %128 = vmatprep.subr.mxu0 0.0
    %129 = vmatpush1.msra.mxu0 %v31
    %130 = vmatprep.subr.mxu0 0.0
    %131 = vmatpush1.msra.mxu0 %v30
    %132 = vmatprep.subr.mxu0 0.0
    %133 = vmatpush1.msra.mxu0 %v29
    %134 = vmatprep.subr.mxu0 0.0
    %135 = vmatpush1.msra.mxu0 %v28
    %136 = vmatprep.subr.mxu0 0.0
    %137 = vmatpush1.msra.mxu0 %v27
    %138 = vmatprep.subr.mxu0 0.0
    %139 = vmatpush1.msra.mxu0 %v26
    %140 = vmatprep.subr.mxu0 0.0
    %141 = vmatpush1.msra.mxu0 %v25
    %142 = vmatprep.subr.mxu0 0.0
    %143 = vmatpush1.msra.mxu0 %v24
    %144 = vmatprep.subr.mxu0 0.0
    %145 = vmatpush1.msra.mxu0 %v23
    %146 = vmatprep.subr.mxu0 0.0
    %147 = vmatpush1.msra.mxu0 %v22
    %148 = vmatprep.subr.mxu0 0.0
    %149 = vmatpush1.msra.mxu0 %v21
    %150 = vmatprep.subr.mxu0 0.0
    %151 = vmatpush1.msra.mxu0 %v20
    %152 = vmatprep.subr.mxu0 0.0
    %153 = vmatpush1.msra.mxu0 %v19
    %154 = vmatprep.subr.mxu0 0.0
    %155 = vmatpush1.msra.mxu0 %v18
    %156 = vmatprep.subr.mxu0 0.0
    %157 = vmatpush1.msra.mxu0 %v17
    %158 = vmatprep.subr.mxu0 0.0
    %159 = vmatpush1.msra.mxu0 %v16
    %160 = vmatprep.subr.mxu0 0.0
    %161 = vmatpush2.msra.mxu0 0.0
    %162 = vmatprep.subr.mxu0 0.0
    %163 = vmatpush2.msra.mxu0 0.0
    %164 = vmatprep.subr.mxu0 0.0
    %165 = vmatpush2.msra.mxu0 0.0
    %166 = vmatprep.subr.mxu0 0.0
    %167 = vmatpush2.msra.mxu0 0.0
    %168 = vmatprep.subr.mxu0 0.0
    %169 = vmatpush2.msra.mxu0 0.0
    %170 = vmatprep.subr.mxu0 0.0
    %171 = vmatpush2.msra.mxu0 0.0
    %172 = vmatprep.subr.mxu0 0.0
    %173 = vmatpush2.msra.mxu0 0.0
    %174 = vmatprep.subr.mxu0 0.0
    %175 = vmatpush2.msra.mxu0 0.0
    %176 = vmatprep.subr.mxu0 0.0
    %177 = vmatpush2.msra.mxu0 0.0
    %178 = vmatprep.subr.mxu0 0.0
    %179 = vmatpush2.msra.mxu0 0.0
    %180 = vmatprep.subr.mxu0 0.0
    %181 = vmatpush2.msra.mxu0 0.0
    %182 = vmatprep.subr.mxu0 0.0
    %183 = vmatpush2.msra.mxu0 0.0
    %184 = vmatprep.subr.mxu0 0.0
    %185 = vmatpush2.msra.mxu0 %v35
    %186 = vmatprep.subr.mxu0 0.0
    %187 = vmatpush2.msra.mxu0 %v34
    %188 = vmatprep.subr.mxu0 0.0
    %189 = vmatpush2.msra.mxu0 %v33
    %190 = vmatprep.subr.mxu0 0.0
    %191 = vmatpush2.msra.mxu0 %v32
    %192 = vmatprep.mubr.f32.mxu0 %v126
    %193 = vmatmul.mubr.f32.gmra.mxu0 %v124
    %v194 = vpop.f32.mrf.mxu0
    %v195 = vadd.f32 0.0, %v194
    %v196 = vpop.f32.mrf.mxu0
    %197 = vdwg.mxu0
    %v198 = vmax.f32 %v116, %v195
    %199 = vrot.lane.b32.xlu0 %v43, 64
    %v200 = vpop.permute.xlu0 %199
    %201 = vrot.lane.b32.xlu0 %v44, 64
    %v202 = vpop.permute.xlu0 %201
    %vm203 = vcmask 523264
    %v204 = vsel %vm203, %v200, %v202
    %v206 = vsel %vm46, %v202, 0
    %208 = vmatprep.subr.mxu0 0.0
    %209 = vmatpush1.msra.mxu0 %v31
    %210 = vmatprep.subr.mxu0 0.0
    %211 = vmatpush1.msra.mxu0 %v30
    %212 = vmatprep.subr.mxu0 0.0
    %213 = vmatpush1.msra.mxu0 %v29
    %214 = vmatprep.subr.mxu0 0.0
    %215 = vmatpush1.msra.mxu0 %v28
    %216 = vmatprep.subr.mxu0 0.0
    %217 = vmatpush1.msra.mxu0 %v27
    %218 = vmatprep.subr.mxu0 0.0
    %219 = vmatpush1.msra.mxu0 %v26
    %220 = vmatprep.subr.mxu0 0.0
    %221 = vmatpush1.msra.mxu0 %v25
    %222 = vmatprep.subr.mxu0 0.0
    %223 = vmatpush1.msra.mxu0 %v24
    %224 = vmatprep.subr.mxu0 0.0
    %225 = vmatpush1.msra.mxu0 %v23
    %226 = vmatprep.subr.mxu0 0.0
    %227 = vmatpush1.msra.mxu0 %v22
    %228 = vmatprep.subr.mxu0 0.0
    %229 = vmatpush1.msra.mxu0 %v21
    %230 = vmatprep.subr.mxu0 0.0
    %231 = vmatpush1.msra.mxu0 %v20
    %232 = vmatprep.subr.mxu0 0.0
    %233 = vmatpush1.msra.mxu0 %v19
    %234 = vmatprep.subr.mxu0 0.0
    %235 = vmatpush1.msra.mxu0 %v18
    %236 = vmatprep.subr.mxu0 0.0
    %237 = vmatpush1.msra.mxu0 %v17
    %238 = vmatprep.subr.mxu0 0.0
    %239 = vmatpush1.msra.mxu0 %v16
    %240 = vmatprep.subr.mxu0 0.0
    %241 = vmatpush2.msra.mxu0 0.0
    %242 = vmatprep.subr.mxu0 0.0
    %243 = vmatpush2.msra.mxu0 0.0
    %244 = vmatprep.subr.mxu0 0.0
    %245 = vmatpush2.msra.mxu0 0.0
    %246 = vmatprep.subr.mxu0 0.0
    %247 = vmatpush2.msra.mxu0 0.0
    %248 = vmatprep.subr.mxu0 0.0
    %249 = vmatpush2.msra.mxu0 0.0
    %250 = vmatprep.subr.mxu0 0.0
    %251 = vmatpush2.msra.mxu0 0.0
    %252 = vmatprep.subr.mxu0 0.0
    %253 = vmatpush2.msra.mxu0 0.0
    %254 = vmatprep.subr.mxu0 0.0
    %255 = vmatpush2.msra.mxu0 0.0
    %256 = vmatprep.subr.mxu0 0.0
    %257 = vmatpush2.msra.mxu0 0.0
    %258 = vmatprep.subr.mxu0 0.0
    %259 = vmatpush2.msra.mxu0 0.0
    %260 = vmatprep.subr.mxu0 0.0
    %261 = vmatpush2.msra.mxu0 0.0
    %262 = vmatprep.subr.mxu0 0.0
    %263 = vmatpush2.msra.mxu0 0.0
    %264 = vmatprep.subr.mxu0 0.0
    %265 = vmatpush2.msra.mxu0 %v35
    %266 = vmatprep.subr.mxu0 0.0
    %267 = vmatpush2.msra.mxu0 %v34
    %268 = vmatprep.subr.mxu0 0.0
    %269 = vmatpush2.msra.mxu0 %v33
    %270 = vmatprep.subr.mxu0 0.0
    %271 = vmatpush2.msra.mxu0 %v32
    %272 = vmatprep.mubr.f32.mxu0 %v206
    %273 = vmatmul.mubr.f32.gmra.mxu0 %v204
    %v274 = vpop.f32.mrf.mxu0
    %v275 = vadd.f32 0.0, %v274
    %v276 = vpop.f32.mrf.mxu0
    %277 = vdwg.mxu0
    %v278 = vmax.f32 %v198, %v275
    %279 = vrot.lane.b32.xlu0 %v43, 32
    %v280 = vpop.permute.xlu0 %279
    %281 = vrot.lane.b32.xlu0 %v44, 32
    %v282 = vpop.permute.xlu0 %281
    %v283 = vsel %vm46, %v280, %v282
    %v285 = vsel %vm46, %v282, 0
    %287 = vmatprep.subr.mxu0 0.0
    %288 = vmatpush1.msra.mxu0 %v31
    %289 = vmatprep.subr.mxu0 0.0
    %290 = vmatpush1.msra.mxu0 %v30
    %291 = vmatprep.subr.mxu0 0.0
    %292 = vmatpush1.msra.mxu0 %v29
    %293 = vmatprep.subr.mxu0 0.0
    %294 = vmatpush1.msra.mxu0 %v28
    %295 = vmatprep.subr.mxu0 0.0
    %296 = vmatpush1.msra.mxu0 %v27
    %297 = vmatprep.subr.mxu0 0.0
    %298 = vmatpush1.msra.mxu0 %v26
    %299 = vmatprep.subr.mxu0 0.0
    %300 = vmatpush1.msra.mxu0 %v25
    %301 = vmatprep.subr.mxu0 0.0
    %302 = vmatpush1.msra.mxu0 %v24
    %303 = vmatprep.subr.mxu0 0.0
    %304 = vmatpush1.msra.mxu0 %v23
    %305 = vmatprep.subr.mxu0 0.0
    %306 = vmatpush1.msra.mxu0 %v22
    %307 = vmatprep.subr.mxu0 0.0
    %308 = vmatpush1.msra.mxu0 %v21
    %309 = vmatprep.subr.mxu0 0.0
    %310 = vmatpush1.msra.mxu0 %v20
    %311 = vmatprep.subr.mxu0 0.0
    %312 = vmatpush1.msra.mxu0 %v19
    %313 = vmatprep.subr.mxu0 0.0
    %314 = vmatpush1.msra.mxu0 %v18
    %315 = vmatprep.subr.mxu0 0.0
    %316 = vmatpush1.msra.mxu0 %v17
    %317 = vmatprep.subr.mxu0 0.0
    %318 = vmatpush1.msra.mxu0 %v16
    %319 = vmatprep.subr.mxu0 0.0
    %320 = vmatpush2.msra.mxu0 0.0
    %321 = vmatprep.subr.mxu0 0.0
    %322 = vmatpush2.msra.mxu0 0.0
    %323 = vmatprep.subr.mxu0 0.0
    %324 = vmatpush2.msra.mxu0 0.0
    %325 = vmatprep.subr.mxu0 0.0
    %326 = vmatpush2.msra.mxu0 0.0
    %327 = vmatprep.subr.mxu0 0.0
    %328 = vmatpush2.msra.mxu0 0.0
    %329 = vmatprep.subr.mxu0 0.0
    %330 = vmatpush2.msra.mxu0 0.0
    %331 = vmatprep.subr.mxu0 0.0
    %332 = vmatpush2.msra.mxu0 0.0
    %333 = vmatprep.subr.mxu0 0.0
    %334 = vmatpush2.msra.mxu0 0.0
    %335 = vmatprep.subr.mxu0 0.0
    %336 = vmatpush2.msra.mxu0 0.0
    %337 = vmatprep.subr.mxu0 0.0
    %338 = vmatpush2.msra.mxu0 0.0
    %339 = vmatprep.subr.mxu0 0.0
    %340 = vmatpush2.msra.mxu0 0.0
    %341 = vmatprep.subr.mxu0 0.0
    %342 = vmatpush2.msra.mxu0 0.0
    %343 = vmatprep.subr.mxu0 0.0
    %344 = vmatpush2.msra.mxu0 %v35
    %345 = vmatprep.subr.mxu0 0.0
    %346 = vmatpush2.msra.mxu0 %v34
    %347 = vmatprep.subr.mxu0 0.0
    %348 = vmatpush2.msra.mxu0 %v33
    %349 = vmatprep.subr.mxu0 0.0
    %350 = vmatpush2.msra.mxu0 %v32
    %351 = vmatprep.mubr.f32.mxu0 %v285
    %352 = vmatmul.mubr.f32.gmra.mxu0 %v283
    %v353 = vpop.f32.mrf.mxu0
    %v354 = vadd.f32 0.0, %v353
    %v355 = vpop.f32.mrf.mxu0
    %356 = vdwg.mxu0
    %v357 = vmax.f32 %v278, %v354
    %v358 = vcombine.high %v15, %v15
    %v360 = vunpack.c.l.s4 1983009808
    %v361 = vunpack.c.0.s8 %v360
    %v362 = vlaneseq
    %v363 = vshrl.u32 %v362, 7
    %v364 = vsub.s32 %v361, %v363
    %v365 = vrot.slane %v358, %v364
    %v367 = vsel %vm46, %v365, 0
    %369 = vmatprep.subr.mxu0 0.0
    %370 = vmatpush1.msra.mxu0 %v31
    %371 = vmatprep.subr.mxu0 0.0
    %372 = vmatpush1.msra.mxu0 %v30
    %373 = vmatprep.subr.mxu0 0.0
    %374 = vmatpush1.msra.mxu0 %v29
    %375 = vmatprep.subr.mxu0 0.0
    %376 = vmatpush1.msra.mxu0 %v28
    %377 = vmatprep.subr.mxu0 0.0
    %378 = vmatpush1.msra.mxu0 %v27
    %379 = vmatprep.subr.mxu0 0.0
    %380 = vmatpush1.msra.mxu0 %v26
    %381 = vmatprep.subr.mxu0 0.0
    %382 = vmatpush1.msra.mxu0 %v25
    %383 = vmatprep.subr.mxu0 0.0
    %384 = vmatpush1.msra.mxu0 %v24
    %385 = vmatprep.subr.mxu0 0.0
    %386 = vmatpush1.msra.mxu0 %v23
    %387 = vmatprep.subr.mxu0 0.0
    %388 = vmatpush1.msra.mxu0 %v22
    %389 = vmatprep.subr.mxu0 0.0
    %390 = vmatpush1.msra.mxu0 %v21
    %391 = vmatprep.subr.mxu0 0.0
    %392 = vmatpush1.msra.mxu0 %v20
    %393 = vmatprep.subr.mxu0 0.0
    %394 = vmatpush1.msra.mxu0 %v19
    %395 = vmatprep.subr.mxu0 0.0
    %396 = vmatpush1.msra.mxu0 %v18
    %397 = vmatprep.subr.mxu0 0.0
    %398 = vmatpush1.msra.mxu0 %v17
    %399 = vmatprep.subr.mxu0 0.0
    %400 = vmatpush1.msra.mxu0 %v16
    %401 = vmatprep.subr.mxu0 0.0
    %402 = vmatpush2.msra.mxu0 0.0
    %403 = vmatprep.subr.mxu0 0.0
    %404 = vmatpush2.msra.mxu0 0.0
    %405 = vmatprep.subr.mxu0 0.0
    %406 = vmatpush2.msra.mxu0 0.0
    %407 = vmatprep.subr.mxu0 0.0
    %408 = vmatpush2.msra.mxu0 0.0
    %409 = vmatprep.subr.mxu0 0.0
    %410 = vmatpush2.msra.mxu0 0.0
    %411 = vmatprep.subr.mxu0 0.0
    %412 = vmatpush2.msra.mxu0 0.0
    %413 = vmatprep.subr.mxu0 0.0
    %414 = vmatpush2.msra.mxu0 0.0
    %415 = vmatprep.subr.mxu0 0.0
    %416 = vmatpush2.msra.mxu0 0.0
    %417 = vmatprep.subr.mxu0 0.0
    %418 = vmatpush2.msra.mxu0 0.0
    %419 = vmatprep.subr.mxu0 0.0
    %420 = vmatpush2.msra.mxu0 0.0
    %421 = vmatprep.subr.mxu0 0.0
    %422 = vmatpush2.msra.mxu0 0.0
    %423 = vmatprep.subr.mxu0 0.0
    %424 = vmatpush2.msra.mxu0 0.0
    %425 = vmatprep.subr.mxu0 0.0
    %426 = vmatpush2.msra.mxu0 %v35
    %427 = vmatprep.subr.mxu0 0.0
    %428 = vmatpush2.msra.mxu0 %v34
    %429 = vmatprep.subr.mxu0 0.0
    %430 = vmatpush2.msra.mxu0 %v33
    %431 = vmatprep.subr.mxu0 0.0
    %432 = vmatpush2.msra.mxu0 %v32
    %433 = vmatprep.mubr.f32.mxu0 %v367
    %434 = vmatmul.mubr.f32.gmra.mxu0 %v44
    %v435 = vpop.f32.mrf.mxu0
    %v436 = vadd.f32 0.0, %v435
    %v437 = vpop.f32.mrf.mxu0
    %438 = vdwg.mxu0
    %v439 = vmax.f32 %v357, %v436
    %440 = vrot.lane.b32.xlu0 %v365, 96
    %v441 = vpop.permute.xlu0 %440
    %v442 = vsel %vm123, %v122, %v441
    %v444 = vsel %vm46, %v441, 0
    %446 = vmatprep.subr.mxu0 0.0
    %447 = vmatpush1.msra.mxu0 %v31
    %448 = vmatprep.subr.mxu0 0.0
    %449 = vmatpush1.msra.mxu0 %v30
    %450 = vmatprep.subr.mxu0 0.0
    %451 = vmatpush1.msra.mxu0 %v29
    %452 = vmatprep.subr.mxu0 0.0
    %453 = vmatpush1.msra.mxu0 %v28
    %454 = vmatprep.subr.mxu0 0.0
    %455 = vmatpush1.msra.mxu0 %v27
    %456 = vmatprep.subr.mxu0 0.0
    %457 = vmatpush1.msra.mxu0 %v26
    %458 = vmatprep.subr.mxu0 0.0
    %459 = vmatpush1.msra.mxu0 %v25
    %460 = vmatprep.subr.mxu0 0.0
    %461 = vmatpush1.msra.mxu0 %v24
    %462 = vmatprep.subr.mxu0 0.0
    %463 = vmatpush1.msra.mxu0 %v23
    %464 = vmatprep.subr.mxu0 0.0
    %465 = vmatpush1.msra.mxu0 %v22
    %466 = vmatprep.subr.mxu0 0.0
    %467 = vmatpush1.msra.mxu0 %v21
    %468 = vmatprep.subr.mxu0 0.0
    %469 = vmatpush1.msra.mxu0 %v20
    %470 = vmatprep.subr.mxu0 0.0
    %471 = vmatpush1.msra.mxu0 %v19
    %472 = vmatprep.subr.mxu0 0.0
    %473 = vmatpush1.msra.mxu0 %v18
    %474 = vmatprep.subr.mxu0 0.0
    %475 = vmatpush1.msra.mxu0 %v17
    %476 = vmatprep.subr.mxu0 0.0
    %477 = vmatpush1.msra.mxu0 %v16
    %478 = vmatprep.subr.mxu0 0.0
    %479 = vmatpush2.msra.mxu0 0.0
    %480 = vmatprep.subr.mxu0 0.0
    %481 = vmatpush2.msra.mxu0 0.0
    %482 = vmatprep.subr.mxu0 0.0
    %483 = vmatpush2.msra.mxu0 0.0
    %484 = vmatprep.subr.mxu0 0.0
    %485 = vmatpush2.msra.mxu0 0.0
    %486 = vmatprep.subr.mxu0 0.0
    %487 = vmatpush2.msra.mxu0 0.0
    %488 = vmatprep.subr.mxu0 0.0
    %489 = vmatpush2.msra.mxu0 0.0
    %490 = vmatprep.subr.mxu0 0.0
    %491 = vmatpush2.msra.mxu0 0.0
    %492 = vmatprep.subr.mxu0 0.0
    %493 = vmatpush2.msra.mxu0 0.0
    %494 = vmatprep.subr.mxu0 0.0
    %495 = vmatpush2.msra.mxu0 0.0
    %496 = vmatprep.subr.mxu0 0.0
    %497 = vmatpush2.msra.mxu0 0.0
    %498 = vmatprep.subr.mxu0 0.0
    %499 = vmatpush2.msra.mxu0 0.0
    %500 = vmatprep.subr.mxu0 0.0
    %501 = vmatpush2.msra.mxu0 0.0
    %502 = vmatprep.subr.mxu0 0.0
    %503 = vmatpush2.msra.mxu0 %v35
    %504 = vmatprep.subr.mxu0 0.0
    %505 = vmatpush2.msra.mxu0 %v34
    %506 = vmatprep.subr.mxu0 0.0
    %507 = vmatpush2.msra.mxu0 %v33
    %508 = vmatprep.subr.mxu0 0.0
    %509 = vmatpush2.msra.mxu0 %v32
    %510 = vmatprep.mubr.f32.mxu0 %v444
    %511 = vmatmul.mubr.f32.gmra.mxu0 %v442
    %v512 = vpop.f32.mrf.mxu0
    %v513 = vadd.f32 0.0, %v512
    %v514 = vpop.f32.mrf.mxu0
    %515 = vdwg.mxu0
    %v516 = vmax.f32 %v439, %v513
    %517 = vrot.lane.b32.xlu0 %v365, 64
    %v518 = vpop.permute.xlu0 %517
    %v519 = vsel %vm203, %v202, %v518
    %v521 = vsel %vm46, %v518, 0
    %523 = vmatprep.subr.mxu0 0.0
    %524 = vmatpush1.msra.mxu0 %v31
    %525 = vmatprep.subr.mxu0 0.0
    %526 = vmatpush1.msra.mxu0 %v30
    %527 = vmatprep.subr.mxu0 0.0
    %528 = vmatpush1.msra.mxu0 %v29
    %529 = vmatprep.subr.mxu0 0.0
    %530 = vmatpush1.msra.mxu0 %v28
    %531 = vmatprep.subr.mxu0 0.0
    %532 = vmatpush1.msra.mxu0 %v27
    %533 = vmatprep.subr.mxu0 0.0
    %534 = vmatpush1.msra.mxu0 %v26
    %535 = vmatprep.subr.mxu0 0.0
    %536 = vmatpush1.msra.mxu0 %v25
    %537 = vmatprep.subr.mxu0 0.0
    %538 = vmatpush1.msra.mxu0 %v24
    %539 = vmatprep.subr.mxu0 0.0
    %540 = vmatpush1.msra.mxu0 %v23
    %541 = vmatprep.subr.mxu0 0.0
    %542 = vmatpush1.msra.mxu0 %v22
    %543 = vmatprep.subr.mxu0 0.0
    %544 = vmatpush1.msra.mxu0 %v21
    %545 = vmatprep.subr.mxu0 0.0
    %546 = vmatpush1.msra.mxu0 %v20
    %547 = vmatprep.subr.mxu0 0.0
    %548 = vmatpush1.msra.mxu0 %v19
    %549 = vmatprep.subr.mxu0 0.0
    %550 = vmatpush1.msra.mxu0 %v18
    %551 = vmatprep.subr.mxu0 0.0
    %552 = vmatpush1.msra.mxu0 %v17
    %553 = vmatprep.subr.mxu0 0.0
    %554 = vmatpush1.msra.mxu0 %v16
    %555 = vmatprep.subr.mxu0 0.0
    %556 = vmatpush2.msra.mxu0 0.0
    %557 = vmatprep.subr.mxu0 0.0
    %558 = vmatpush2.msra.mxu0 0.0
    %559 = vmatprep.subr.mxu0 0.0
    %560 = vmatpush2.msra.mxu0 0.0
    %561 = vmatprep.subr.mxu0 0.0
    %562 = vmatpush2.msra.mxu0 0.0
    %563 = vmatprep.subr.mxu0 0.0
    %564 = vmatpush2.msra.mxu0 0.0
    %565 = vmatprep.subr.mxu0 0.0
    %566 = vmatpush2.msra.mxu0 0.0
    %567 = vmatprep.subr.mxu0 0.0
    %568 = vmatpush2.msra.mxu0 0.0
    %569 = vmatprep.subr.mxu0 0.0
    %570 = vmatpush2.msra.mxu0 0.0
    %571 = vmatprep.subr.mxu0 0.0
    %572 = vmatpush2.msra.mxu0 0.0
    %573 = vmatprep.subr.mxu0 0.0
    %574 = vmatpush2.msra.mxu0 0.0
    %575 = vmatprep.subr.mxu0 0.0
    %576 = vmatpush2.msra.mxu0 0.0
    %577 = vmatprep.subr.mxu0 0.0
    %578 = vmatpush2.msra.mxu0 0.0
    %579 = vmatprep.subr.mxu0 0.0
    %580 = vmatpush2.msra.mxu0 %v35
    %581 = vmatprep.subr.mxu0 0.0
    %582 = vmatpush2.msra.mxu0 %v34
    %583 = vmatprep.subr.mxu0 0.0
    %584 = vmatpush2.msra.mxu0 %v33
    %585 = vmatprep.subr.mxu0 0.0
    %586 = vmatpush2.msra.mxu0 %v32
    %587 = vmatprep.mubr.f32.mxu0 %v521
    %588 = vmatmul.mubr.f32.gmra.mxu0 %v519
    %v589 = vpop.f32.mrf.mxu0
    %v590 = vadd.f32 0.0, %v589
    %v591 = vpop.f32.mrf.mxu0
    %592 = vdwg.mxu0
    %v593 = vmax.f32 %v516, %v590
    %594 = vrot.lane.b32.xlu0 %v365, 32
    %v595 = vpop.permute.xlu0 %594
    %v596 = vsel %vm46, %v282, %v595
    %v598 = vsel %vm46, %v595, 0
    %600 = vmatprep.subr.mxu0 0.0
    %601 = vmatpush1.msra.mxu0 %v31
    %602 = vmatprep.subr.mxu0 0.0
    %603 = vmatpush1.msra.mxu0 %v30
    %604 = vmatprep.subr.mxu0 0.0
    %605 = vmatpush1.msra.mxu0 %v29
    %606 = vmatprep.subr.mxu0 0.0
    %607 = vmatpush1.msra.mxu0 %v28
    %608 = vmatprep.subr.mxu0 0.0
    %609 = vmatpush1.msra.mxu0 %v27
    %610 = vmatprep.subr.mxu0 0.0
    %611 = vmatpush1.msra.mxu0 %v26
    %612 = vmatprep.subr.mxu0 0.0
    %613 = vmatpush1.msra.mxu0 %v25
    %614 = vmatprep.subr.mxu0 0.0
    %615 = vmatpush1.msra.mxu0 %v24
    %616 = vmatprep.subr.mxu0 0.0
    %617 = vmatpush1.msra.mxu0 %v23
    %618 = vmatprep.subr.mxu0 0.0
    %619 = vmatpush1.msra.mxu0 %v22
    %620 = vmatprep.subr.mxu0 0.0
    %621 = vmatpush1.msra.mxu0 %v21
    %622 = vmatprep.subr.mxu0 0.0
    %623 = vmatpush1.msra.mxu0 %v20
    %624 = vmatprep.subr.mxu0 0.0
    %625 = vmatpush1.msra.mxu0 %v19
    %626 = vmatprep.subr.mxu0 0.0
    %627 = vmatpush1.msra.mxu0 %v18
    %628 = vmatprep.subr.mxu0 0.0
    %629 = vmatpush1.msra.mxu0 %v17
    %630 = vmatprep.subr.mxu0 0.0
    %631 = vmatpush1.msra.mxu0 %v16
    %632 = vmatprep.subr.mxu0 0.0
    %633 = vmatpush2.msra.mxu0 0.0
    %634 = vmatprep.subr.mxu0 0.0
    %635 = vmatpush2.msra.mxu0 0.0
    %636 = vmatprep.subr.mxu0 0.0
    %637 = vmatpush2.msra.mxu0 0.0
    %638 = vmatprep.subr.mxu0 0.0
    %639 = vmatpush2.msra.mxu0 0.0
    %640 = vmatprep.subr.mxu0 0.0
    %641 = vmatpush2.msra.mxu0 0.0
    %642 = vmatprep.subr.mxu0 0.0
    %643 = vmatpush2.msra.mxu0 0.0
    %644 = vmatprep.subr.mxu0 0.0
    %645 = vmatpush2.msra.mxu0 0.0
    %646 = vmatprep.subr.mxu0 0.0
    %647 = vmatpush2.msra.mxu0 0.0
    %648 = vmatprep.subr.mxu0 0.0
    %649 = vmatpush2.msra.mxu0 0.0
    %650 = vmatprep.subr.mxu0 0.0
    %651 = vmatpush2.msra.mxu0 0.0
    %652 = vmatprep.subr.mxu0 0.0
    %653 = vmatpush2.msra.mxu0 0.0
    %654 = vmatprep.subr.mxu0 0.0
    %655 = vmatpush2.msra.mxu0 0.0
    %656 = vmatprep.subr.mxu0 0.0
    %657 = vmatpush2.msra.mxu0 %v35
    %658 = vmatprep.subr.mxu0 0.0
    %659 = vmatpush2.msra.mxu0 %v34
    %660 = vmatprep.subr.mxu0 0.0
    %661 = vmatpush2.msra.mxu0 %v33
    %662 = vmatprep.subr.mxu0 0.0
    %663 = vmatpush2.msra.mxu0 %v32
    %664 = vmatprep.mubr.f32.mxu0 %v598
    %665 = vmatmul.mubr.f32.gmra.mxu0 %v596
    %v666 = vpop.f32.mrf.mxu0
    %v667 = vadd.f32 0.0, %v666
    %v668 = vpop.f32.mrf.mxu0
    %669 = vdwg.mxu0
    %v670 = vmax.f32 %v593, %v667
    %v671 = vcombine.high %v365, %v365
    %v673 = vsel %vm46, %v671, 0
    %675 = vmatprep.subr.mxu0 0.0
    %676 = vmatpush1.msra.mxu0 %v31
    %677 = vmatprep.subr.mxu0 0.0
    %678 = vmatpush1.msra.mxu0 %v30
    %679 = vmatprep.subr.mxu0 0.0
    %680 = vmatpush1.msra.mxu0 %v29
    %681 = vmatprep.subr.mxu0 0.0
    %682 = vmatpush1.msra.mxu0 %v28
    %683 = vmatprep.subr.mxu0 0.0
    %684 = vmatpush1.msra.mxu0 %v27
    %685 = vmatprep.subr.mxu0 0.0
    %686 = vmatpush1.msra.mxu0 %v26
    %687 = vmatprep.subr.mxu0 0.0
    %688 = vmatpush1.msra.mxu0 %v25
    %689 = vmatprep.subr.mxu0 0.0
    %690 = vmatpush1.msra.mxu0 %v24
    %691 = vmatprep.subr.mxu0 0.0
    %692 = vmatpush1.msra.mxu0 %v23
    %693 = vmatprep.subr.mxu0 0.0
    %694 = vmatpush1.msra.mxu0 %v22
    %695 = vmatprep.subr.mxu0 0.0
    %696 = vmatpush1.msra.mxu0 %v21
    %697 = vmatprep.subr.mxu0 0.0
    %698 = vmatpush1.msra.mxu0 %v20
    %699 = vmatprep.subr.mxu0 0.0
    %700 = vmatpush1.msra.mxu0 %v19
    %701 = vmatprep.subr.mxu0 0.0
    %702 = vmatpush1.msra.mxu0 %v18
    %703 = vmatprep.subr.mxu0 0.0
    %704 = vmatpush1.msra.mxu0 %v17
    %705 = vmatprep.subr.mxu0 0.0
    %706 = vmatpush1.msra.mxu0 %v16
    %707 = vmatprep.subr.mxu0 0.0
    %708 = vmatpush2.msra.mxu0 0.0
    %709 = vmatprep.subr.mxu0 0.0
    %710 = vmatpush2.msra.mxu0 0.0
    %711 = vmatprep.subr.mxu0 0.0
    %712 = vmatpush2.msra.mxu0 0.0
    %713 = vmatprep.subr.mxu0 0.0
    %714 = vmatpush2.msra.mxu0 0.0
    %715 = vmatprep.subr.mxu0 0.0
    %716 = vmatpush2.msra.mxu0 0.0
    %717 = vmatprep.subr.mxu0 0.0
    %718 = vmatpush2.msra.mxu0 0.0
    %719 = vmatprep.subr.mxu0 0.0
    %720 = vmatpush2.msra.mxu0 0.0
    %721 = vmatprep.subr.mxu0 0.0
    %722 = vmatpush2.msra.mxu0 0.0
    %723 = vmatprep.subr.mxu0 0.0
    %724 = vmatpush2.msra.mxu0 0.0
    %725 = vmatprep.subr.mxu0 0.0
    %726 = vmatpush2.msra.mxu0 0.0
    %727 = vmatprep.subr.mxu0 0.0
    %728 = vmatpush2.msra.mxu0 0.0
    %729 = vmatprep.subr.mxu0 0.0
    %730 = vmatpush2.msra.mxu0 0.0
    %731 = vmatprep.subr.mxu0 0.0
    %732 = vmatpush2.msra.mxu0 %v35
    %733 = vmatprep.subr.mxu0 0.0
    %734 = vmatpush2.msra.mxu0 %v34
    %735 = vmatprep.subr.mxu0 0.0
    %736 = vmatpush2.msra.mxu0 %v33
    %737 = vmatprep.subr.mxu0 0.0
    %738 = vmatpush2.msra.mxu0 %v32
    %739 = vmatprep.mubr.f32.mxu0 %v673
    %740 = vmatmul.mubr.f32.gmra.mxu0 %v365
    %v741 = vpop.f32.mrf.mxu0
    %v742 = vadd.f32 0.0, %v741
    %v743 = vpop.f32.mrf.mxu0
    %744 = vdwg.mxu0
    %v745 = vmax.f32 %v670, %v742
    %746 = vrot.lane.b32.xlu0 %v671, 96
    %v747 = vpop.permute.xlu0 %746
    %v748 = vsel %vm123, %v441, %v747
    %v750 = vsel %vm46, %v747, 0
    %752 = vmatprep.subr.mxu0 0.0
    %753 = vmatpush1.msra.mxu0 %v31
    %754 = vmatprep.subr.mxu0 0.0
    %755 = vmatpush1.msra.mxu0 %v30
    %756 = vmatprep.subr.mxu0 0.0
    %757 = vmatpush1.msra.mxu0 %v29
    %758 = vmatprep.subr.mxu0 0.0
    %759 = vmatpush1.msra.mxu0 %v28
    %760 = vmatprep.subr.mxu0 0.0
    %761 = vmatpush1.msra.mxu0 %v27
    %762 = vmatprep.subr.mxu0 0.0
    %763 = vmatpush1.msra.mxu0 %v26
    %764 = vmatprep.subr.mxu0 0.0
    %765 = vmatpush1.msra.mxu0 %v25
    %766 = vmatprep.subr.mxu0 0.0
    %767 = vmatpush1.msra.mxu0 %v24
    %768 = vmatprep.subr.mxu0 0.0
    %769 = vmatpush1.msra.mxu0 %v23
    %770 = vmatprep.subr.mxu0 0.0
    %771 = vmatpush1.msra.mxu0 %v22
    %772 = vmatprep.subr.mxu0 0.0
    %773 = vmatpush1.msra.mxu0 %v21
    %774 = vmatprep.subr.mxu0 0.0
    %775 = vmatpush1.msra.mxu0 %v20
    %776 = vmatprep.subr.mxu0 0.0
    %777 = vmatpush1.msra.mxu0 %v19
    %778 = vmatprep.subr.mxu0 0.0
    %779 = vmatpush1.msra.mxu0 %v18
    %780 = vmatprep.subr.mxu0 0.0
    %781 = vmatpush1.msra.mxu0 %v17
    %782 = vmatprep.subr.mxu0 0.0
    %783 = vmatpush1.msra.mxu0 %v16
    %784 = vmatprep.subr.mxu0 0.0
    %785 = vmatpush2.msra.mxu0 0.0
    %786 = vmatprep.subr.mxu0 0.0
    %787 = vmatpush2.msra.mxu0 0.0
    %788 = vmatprep.subr.mxu0 0.0
    %789 = vmatpush2.msra.mxu0 0.0
    %790 = vmatprep.subr.mxu0 0.0
    %791 = vmatpush2.msra.mxu0 0.0
    %792 = vmatprep.subr.mxu0 0.0
    %793 = vmatpush2.msra.mxu0 0.0
    %794 = vmatprep.subr.mxu0 0.0
    %795 = vmatpush2.msra.mxu0 0.0
    %796 = vmatprep.subr.mxu0 0.0
    %797 = vmatpush2.msra.mxu0 0.0
    %798 = vmatprep.subr.mxu0 0.0
    %799 = vmatpush2.msra.mxu0 0.0
    %800 = vmatprep.subr.mxu0 0.0
    %801 = vmatpush2.msra.mxu0 0.0
    %802 = vmatprep.subr.mxu0 0.0
    %803 = vmatpush2.msra.mxu0 0.0
    %804 = vmatprep.subr.mxu0 0.0
    %805 = vmatpush2.msra.mxu0 0.0
    %806 = vmatprep.subr.mxu0 0.0
    %807 = vmatpush2.msra.mxu0 0.0
    %808 = vmatprep.subr.mxu0 0.0
    %809 = vmatpush2.msra.mxu0 %v35
    %810 = vmatprep.subr.mxu0 0.0
    %811 = vmatpush2.msra.mxu0 %v34
    %812 = vmatprep.subr.mxu0 0.0
    %813 = vmatpush2.msra.mxu0 %v33
    %814 = vmatprep.subr.mxu0 0.0
    %815 = vmatpush2.msra.mxu0 %v32
    %816 = vmatprep.mubr.f32.mxu0 %v750
    %817 = vmatmul.mubr.f32.gmra.mxu0 %v748
    %v818 = vpop.f32.mrf.mxu0
    %v819 = vadd.f32 0.0, %v818
    %v820 = vpop.f32.mrf.mxu0
    %821 = vdwg.mxu0
    %v822 = vmax.f32 %v745, %v819
    %823 = vrot.lane.b32.xlu0 %v671, 64
    %v824 = vpop.permute.xlu0 %823
    %v825 = vsel %vm203, %v518, %v824
    %v827 = vsel %vm46, %v824, 0
    %829 = vmatprep.subr.mxu0 0.0
    %830 = vmatpush1.msra.mxu0 %v31
    %831 = vmatprep.subr.mxu0 0.0
    %832 = vmatpush1.msra.mxu0 %v30
    %833 = vmatprep.subr.mxu0 0.0
    %834 = vmatpush1.msra.mxu0 %v29
    %835 = vmatprep.subr.mxu0 0.0
    %836 = vmatpush1.msra.mxu0 %v28
    %837 = vmatprep.subr.mxu0 0.0
    %838 = vmatpush1.msra.mxu0 %v27
    %839 = vmatprep.subr.mxu0 0.0
    %840 = vmatpush1.msra.mxu0 %v26
    %841 = vmatprep.subr.mxu0 0.0
    %842 = vmatpush1.msra.mxu0 %v25
    %843 = vmatprep.subr.mxu0 0.0
    %844 = vmatpush1.msra.mxu0 %v24
    %845 = vmatprep.subr.mxu0 0.0
    %846 = vmatpush1.msra.mxu0 %v23
    %847 = vmatprep.subr.mxu0 0.0
    %848 = vmatpush1.msra.mxu0 %v22
    %849 = vmatprep.subr.mxu0 0.0
    %850 = vmatpush1.msra.mxu0 %v21
    %851 = vmatprep.subr.mxu0 0.0
    %852 = vmatpush1.msra.mxu0 %v20
    %853 = vmatprep.subr.mxu0 0.0
    %854 = vmatpush1.msra.mxu0 %v19
    %855 = vmatprep.subr.mxu0 0.0
    %856 = vmatpush1.msra.mxu0 %v18
    %857 = vmatprep.subr.mxu0 0.0
    %858 = vmatpush1.msra.mxu0 %v17
    %859 = vmatprep.subr.mxu0 0.0
    %860 = vmatpush1.msra.mxu0 %v16
    %861 = vmatprep.subr.mxu0 0.0
    %862 = vmatpush2.msra.mxu0 0.0
    %863 = vmatprep.subr.mxu0 0.0
    %864 = vmatpush2.msra.mxu0 0.0
    %865 = vmatprep.subr.mxu0 0.0
    %866 = vmatpush2.msra.mxu0 0.0
    %867 = vmatprep.subr.mxu0 0.0
    %868 = vmatpush2.msra.mxu0 0.0
    %869 = vmatprep.subr.mxu0 0.0
    %870 = vmatpush2.msra.mxu0 0.0
    %871 = vmatprep.subr.mxu0 0.0
    %872 = vmatpush2.msra.mxu0 0.0
    %873 = vmatprep.subr.mxu0 0.0
    %874 = vmatpush2.msra.mxu0 0.0
    %875 = vmatprep.subr.mxu0 0.0
    %876 = vmatpush2.msra.mxu0 0.0
    %877 = vmatprep.subr.mxu0 0.0
    %878 = vmatpush2.msra.mxu0 0.0
    %879 = vmatprep.subr.mxu0 0.0
    %880 = vmatpush2.msra.mxu0 0.0
    %881 = vmatprep.subr.mxu0 0.0
    %882 = vmatpush2.msra.mxu0 0.0
    %883 = vmatprep.subr.mxu0 0.0
    %884 = vmatpush2.msra.mxu0 0.0
    %885 = vmatprep.subr.mxu0 0.0
    %886 = vmatpush2.msra.mxu0 %v35
    %887 = vmatprep.subr.mxu0 0.0
    %888 = vmatpush2.msra.mxu0 %v34
    %889 = vmatprep.subr.mxu0 0.0
    %890 = vmatpush2.msra.mxu0 %v33
    %891 = vmatprep.subr.mxu0 0.0
    %892 = vmatpush2.msra.mxu0 %v32
    %893 = vmatprep.mubr.f32.mxu0 %v827
    %894 = vmatmul.mubr.f32.gmra.mxu0 %v825
    %v895 = vpop.f32.mrf.mxu0
    %v896 = vadd.f32 0.0, %v895
    %v897 = vpop.f32.mrf.mxu0
    %898 = vdwg.mxu0
    %v899 = vmax.f32 %v822, %v896
    %900 = vrot.lane.b32.xlu0 %v671, 32
    %v901 = vpop.permute.xlu0 %900
    %v902 = vsel %vm46, %v595, %v901
    %v904 = vsel %vm46, %v901, 0
    %906 = vmatprep.subr.mxu0 0.0
    %907 = vmatpush1.msra.mxu0 %v31
    %908 = vmatprep.subr.mxu0 0.0
    %909 = vmatpush1.msra.mxu0 %v30
    %910 = vmatprep.subr.mxu0 0.0
    %911 = vmatpush1.msra.mxu0 %v29
    %912 = vmatprep.subr.mxu0 0.0
    %913 = vmatpush1.msra.mxu0 %v28
    %914 = vmatprep.subr.mxu0 0.0
    %915 = vmatpush1.msra.mxu0 %v27
    %916 = vmatprep.subr.mxu0 0.0
    %917 = vmatpush1.msra.mxu0 %v26
    %918 = vmatprep.subr.mxu0 0.0
    %919 = vmatpush1.msra.mxu0 %v25
    %920 = vmatprep.subr.mxu0 0.0
    %921 = vmatpush1.msra.mxu0 %v24
    %922 = vmatprep.subr.mxu0 0.0
    %923 = vmatpush1.msra.mxu0 %v23
    %924 = vmatprep.subr.mxu0 0.0
    %925 = vmatpush1.msra.mxu0 %v22
    %926 = vmatprep.subr.mxu0 0.0
    %927 = vmatpush1.msra.mxu0 %v21
    %928 = vmatprep.subr.mxu0 0.0
    %929 = vmatpush1.msra.mxu0 %v20
    %930 = vmatprep.subr.mxu0 0.0
    %931 = vmatpush1.msra.mxu0 %v19
    %932 = vmatprep.subr.mxu0 0.0
    %933 = vmatpush1.msra.mxu0 %v18
    %934 = vmatprep.subr.mxu0 0.0
    %935 = vmatpush1.msra.mxu0 %v17
    %936 = vmatprep.subr.mxu0 0.0
    %937 = vmatpush1.msra.mxu0 %v16
    %938 = vmatprep.subr.mxu0 0.0
    %939 = vmatpush2.msra.mxu0 0.0
    %940 = vmatprep.subr.mxu0 0.0
    %941 = vmatpush2.msra.mxu0 0.0
    %942 = vmatprep.subr.mxu0 0.0
    %943 = vmatpush2.msra.mxu0 0.0
    %944 = vmatprep.subr.mxu0 0.0
    %945 = vmatpush2.msra.mxu0 0.0
    %946 = vmatprep.subr.mxu0 0.0
    %947 = vmatpush2.msra.mxu0 0.0
    %948 = vmatprep.subr.mxu0 0.0
    %949 = vmatpush2.msra.mxu0 0.0
    %950 = vmatprep.subr.mxu0 0.0
    %951 = vmatpush2.msra.mxu0 0.0
    %952 = vmatprep.subr.mxu0 0.0
    %953 = vmatpush2.msra.mxu0 0.0
    %954 = vmatprep.subr.mxu0 0.0
    %955 = vmatpush2.msra.mxu0 0.0
    %956 = vmatprep.subr.mxu0 0.0
    %957 = vmatpush2.msra.mxu0 0.0
    %958 = vmatprep.subr.mxu0 0.0
    %959 = vmatpush2.msra.mxu0 0.0
    %960 = vmatprep.subr.mxu0 0.0
    %961 = vmatpush2.msra.mxu0 0.0
    %962 = vmatprep.subr.mxu0 0.0
    %963 = vmatpush2.msra.mxu0 %v35
    %964 = vmatprep.subr.mxu0 0.0
    %965 = vmatpush2.msra.mxu0 %v34
    %966 = vmatprep.subr.mxu0 0.0
    %967 = vmatpush2.msra.mxu0 %v33
    %968 = vmatprep.subr.mxu0 0.0
    %969 = vmatpush2.msra.mxu0 %v32
    %970 = vmatprep.mubr.f32.mxu0 %v904
    %971 = vmatmul.mubr.f32.gmra.mxu0 %v902
    %v972 = vpop.f32.mrf.mxu0
    %v973 = vadd.f32 0.0, %v972
    %v974 = vpop.f32.mrf.mxu0
    %975 = vdwg.mxu0
    %v976 = vmax.f32 %v899, %v973
    %v977 = vld [vmem:[%s2] sm:$0x1]
    %v979 = vlaneseq
    %v980 = vshrl.u32 %v979, 7
    %v981 = vsub.s32 0, %v980
    %v982 = vrot.slane %v977, %v981
    %v984 = vadd.f32 %v976, %v982
    %v985 = vmax.f32 %v984, 0.0
    %vm986 = vcmask 254976
    %987 = vst.msk [vmem:[#allocation2] sm:$0x3] %vm986, %v985
    // Predicated region
    $region14: #{cnn_forward.1} parent=1 // pred_check
      _
    $region15: #{cnn_forward.1} parent=1 // pred_check_branch
      %989 = sbr.rel (0) target = $region17
    $region16: #{cnn_forward.1} parent=1 // pred_region
      %s991 = ssub.s32 32, 32
      %992 = vsyncadd [#allocation3], %s991
      %s994 = sshll.u32 [#allocation2], 4
      %s995 = int_to_ptr.vmem [resolvable:$true] %s994
      %997 = dma.vmem_to_hbm [thread:$0]  %s995, 32, %s3, [#allocation3]
    $region17: #{cnn_forward.1} parent=1 // pred_fallthru
      _
    // Predicated region
    $region18: #{cnn_forward.1} parent=1 // pred_check
      _
    $region19: #{cnn_forward.1} parent=1 // pred_check_branch
      %999 = sbr.rel (0) target = $region21
    $region20: #{cnn_forward.1} parent=1 // pred_region
      %1000 = dma.done [#allocation3], 32
    $region21: #{cnn_forward.1} parent=1 // pred_fallthru
      _
    %1001 = vsyncpa [#allocation3], 1

</llo_original>
